<compile_context>
chip_gen: v7x
topology: tpu7x:2x2x1
jax: 0.10.0
libtpu: 0.0.40
codegen_flags: <defaults>
</compile_context>

<pallas_src>
import math
import functools

import jax
import jax.numpy as jnp
from jax import lax
from jax.experimental import pallas as pl
from jax.experimental.pallas import tpu as pltpu


# ----------------------------------------------------------------------------
# helpers
# ----------------------------------------------------------------------------
def _round_up(x: int, m: int) -> int:
    return ((x + m - 1) // m) * m


def _pad2d(a, rows: int, cols: int):
    pr, pc = rows - a.shape[0], cols - a.shape[1]
    if pr == 0 and pc == 0:
        return a
    return jnp.pad(a, ((0, pr), (0, pc)))


_VMEM_LIMIT = 32 * 1024 * 1024  # safe on v5e/v6e (128 MiB phys) and v7x (64 MiB)

# contract last axis of lhs with last axis of rhs: (m, k) x (n, k) -> (m, n)
_DN_LAST_LAST = (((1,), (1,)), ((), ()))


# ----------------------------------------------------------------------------
# Pallas kernels
# ----------------------------------------------------------------------------
def _dense_kernel(x_ref, w_ref, b_ref, o_ref, acc_ref):
    # o = x @ W.T + b   (lr == False branch: F.linear); W kept in (N, K) layout,
    # contraction on the last axes avoids any in-kernel transpose.
    k = pl.program_id(2)

    @pl.when(k == 0)
    def _():
        acc_ref[...] = jnp.zeros_like(acc_ref)

    acc_ref[...] += lax.dot_general(
        x_ref[...], w_ref[...], _DN_LAST_LAST,
        preferred_element_type=jnp.float32)

    @pl.when(k == pl.num_programs(2) - 1)
    def _():
        o_ref[...] = (acc_ref[...] + b_ref[...]).astype(o_ref.dtype)


def _lowrank2_kernel(x_ref, a_ref, b_ref, bias_ref, o_ref):
    # o = (x @ A) @ B.T + bias   (step 'K': A=V, B=K ; step 'L': A=L, B=U)
    xa = jnp.dot(x_ref[...], a_ref[...], preferred_element_type=jnp.float32)
    acc = lax.dot_general(xa, b_ref[...], _DN_LAST_LAST,
                          preferred_element_type=jnp.float32)
    o_ref[...] = (acc + bias_ref[...]).astype(o_ref.dtype)


def _lowrank3_kernel(x_ref, vhat_ref, shat_ref, uhat_ref, bias_ref, o_ref):
    # o = ((x @ V_hat) @ S_hat.T) @ U_hat.T + bias   (step 'S')
    # S_hat is kept as a full matrix (DLRT S-step generally makes it dense).
    xv = jnp.dot(x_ref[...], vhat_ref[...], preferred_element_type=jnp.float32)
    xvs = lax.dot_general(xv, shat_ref[...], _DN_LAST_LAST,
                          preferred_element_type=jnp.float32)
    acc = lax.dot_general(xvs, uhat_ref[...], _DN_LAST_LAST,
                          preferred_element_type=jnp.float32)
    o_ref[...] = (acc + bias_ref[...]).astype(o_ref.dtype)


# ----------------------------------------------------------------------------
# wrappers (pad to legal tile shapes, build grids, slice back)
# ----------------------------------------------------------------------------
@functools.partial(jax.jit, static_argnames=("tm", "tn", "tk"))
def dense_forward(x, weight, bias2d, *, tm=256, tn=256, tk=512):
    M, K = x.shape
    N = weight.shape[0]
    tm = min(tm, _round_up(M, 8))      # sublane-aligned batch tile
    tn = min(tn, _round_up(N, 128))    # lane-aligned output tile
    tk = min(tk, _round_up(K, 128))    # lane-aligned contraction tile
    Mp, Np, Kp = _round_up(M, tm), _round_up(N, tn), _round_up(K, tk)

    xp = _pad2d(x, Mp, Kp)
    wp = _pad2d(weight, Np, Kp)
    bp = _pad2d(bias2d, 1, Np)

    grid = (Mp // tm, Np // tn, Kp // tk)
    bytes_f32 = 4
    cost = pl.CostEstimate(
        flops=2 * Mp * Np * Kp,
        transcendentals=0,
        bytes_accessed=bytes_f32 * (Mp * Kp + Np * Kp + Mp * Np + Np))

    out = pl.pallas_call(
        _dense_kernel,
        out_shape=jax.ShapeDtypeStruct((Mp, Np), x.dtype),
        grid_spec=pltpu.PrefetchScalarGridSpec(
            num_scalar_prefetch=0,
            grid=grid,
            in_specs=[
                pl.BlockSpec((tm, tk), lambda i, j, k: (i, k)),   # x
                pl.BlockSpec((tn, tk), lambda i, j, k: (j, k)),   # weight (N,K)
                pl.BlockSpec((1, tn), lambda i, j, k: (0, j)),    # bias
            ],
            out_specs=pl.BlockSpec((tm, tn), lambda i, j, k: (i, j)),
            scratch_shapes=[pltpu.VMEM((tm, tn), jnp.float32)]),
        compiler_params=pltpu.CompilerParams(
            dimension_semantics=("parallel", "parallel", "arbitrary"),
            vmem_limit_bytes=_VMEM_LIMIT),
        cost_estimate=cost,
    )(xp, wp, bp)
    return out[:M, :N]


@functools.partial(jax.jit, static_argnames=("tm",))
def lowrank2_forward(x, A, B, bias2d, *, tm=256):
    # x: (M, K), A: (K, r), B: (N, r). Factors are small -> fully VMEM-resident;
    # only x / output are tiled (batch dimension) and pipelined.
    M, K = x.shape
    R = A.shape[1]
    N = B.shape[0]
    tm = min(tm, _round_up(M, 8))
    Mp = _round_up(M, tm)
    Kp = _round_up(K, 128)
    Rp = _round_up(R, 128)
    Np = _round_up(N, 128)

    xp = _pad2d(x, Mp, Kp)
    Ap = _pad2d(A, Kp, Rp)
    Bp = _pad2d(B, Np, Rp)
    bp = _pad2d(bias2d, 1, Np)

    cost = pl.CostEstimate(
        flops=2 * Mp * Rp * (Kp + Np),
        transcendentals=0,
        bytes_accessed=4 * (Mp * Kp + Kp * Rp + Np * Rp + Mp * Np + Np))

    out = pl.pallas_call(
        _lowrank2_kernel,
        out_shape=jax.ShapeDtypeStruct((Mp, Np), x.dtype),
        grid_spec=pltpu.PrefetchScalarGridSpec(
            num_scalar_prefetch=0,
            grid=(Mp // tm,),
            in_specs=[
                pl.BlockSpec((tm, Kp), lambda i: (i, 0)),   # x tile (streamed)
                pl.BlockSpec((Kp, Rp), lambda i: (0, 0)),   # A resident
                pl.BlockSpec((Np, Rp), lambda i: (0, 0)),   # B resident
                pl.BlockSpec((1, Np), lambda i: (0, 0)),    # bias resident
            ],
            out_specs=pl.BlockSpec((tm, Np), lambda i: (i, 0))),
        compiler_params=pltpu.CompilerParams(
            dimension_semantics=("parallel",),
            vmem_limit_bytes=_VMEM_LIMIT),
        cost_estimate=cost,
    )(xp, Ap, Bp, bp)
    return out[:M, :N]


@functools.partial(jax.jit, static_argnames=("tm",))
def lowrank3_forward(x, V_hat, S_hat, U_hat, bias2d, *, tm=256):
    # x: (M, K), V_hat: (K, r2), S_hat: (r2, r2), U_hat: (N, r2)
    M, K = x.shape
    R = V_hat.shape[1]
    N = U_hat.shape[0]
    tm = min(tm, _round_up(M, 8))
    Mp = _round_up(M, tm)
    Kp = _round_up(K, 128)
    Rp = _round_up(R, 128)
    Np = _round_up(N, 128)

    xp = _pad2d(x, Mp, Kp)
    Vp = _pad2d(V_hat, Kp, Rp)
    Sp = _pad2d(S_hat, Rp, Rp)
    Up = _pad2d(U_hat, Np, Rp)
    bp = _pad2d(bias2d, 1, Np)

    cost = pl.CostEstimate(
        flops=2 * Mp * Rp * (Kp + Rp + Np),
        transcendentals=0,
        bytes_accessed=4 * (Mp * Kp + Kp * Rp + Rp * Rp + Np * Rp + Mp * Np + Np))

    out = pl.pallas_call(
        _lowrank3_kernel,
        out_shape=jax.ShapeDtypeStruct((Mp, Np), x.dtype),
        grid_spec=pltpu.PrefetchScalarGridSpec(
            num_scalar_prefetch=0,
            grid=(Mp // tm,),
            in_specs=[
                pl.BlockSpec((tm, Kp), lambda i: (i, 0)),   # x tile (streamed)
                pl.BlockSpec((Kp, Rp), lambda i: (0, 0)),   # V_hat resident
                pl.BlockSpec((Rp, Rp), lambda i: (0, 0)),   # S_hat resident
                pl.BlockSpec((Np, Rp), lambda i: (0, 0)),   # U_hat resident
                pl.BlockSpec((1, Np), lambda i: (0, 0)),    # bias resident
            ],
            out_specs=pl.BlockSpec((tm, Np), lambda i: (i, 0))),
        compiler_params=pltpu.CompilerParams(
            dimension_semantics=("parallel",),
            vmem_limit_bytes=_VMEM_LIMIT),
        cost_estimate=cost,
    )(xp, Vp, Sp, Up, bp)
    return out[:M, :N]


# ----------------------------------------------------------------------------
# JAX re-implementation of the Linear (low-rank) module
# ----------------------------------------------------------------------------
class LinearLR:
    def __init__(self, key, in_features, out_features, bias=True, rank=None,
                 fixed=False, step='K', decay=1):
        self.in_features = in_features
        self.out_features = out_features
        self.fixed = fixed
        self.step = step
        self.decay = decay
        self.lr = rank is not None
        self.rmax = int(min(in_features, out_features) / 2)
        if not self.fixed:
            self.rank = None if rank is None else min(rank, self.rmax)
        else:
            self.rank = min(rank, in_features, out_features)
        self.dynamic_rank = self.rank

        keys = jax.random.split(key, 10)
        # reset_parameters(): kaiming_uniform_(a=sqrt(5)) -> U(-1/sqrt(fan_in), ..)
        fan_in = in_features
        bound = 1.0 / math.sqrt(fan_in)
        self.weight = jax.random.uniform(keys[0], (out_features, in_features),
                                         jnp.float32, -bound, bound)
        if bias:
            self.bias = jax.random.uniform(keys[1], (out_features,),
                                           jnp.float32, -bound, bound)
        else:
            self.bias = None

        if self.lr:
            if not self.fixed:
                r2 = 2 * self.rmax
                s = jnp.sort(jnp.abs(jax.random.normal(keys[2], (r2,))))[::-1]
                self.S_hat = jnp.diag(s)
                U = jax.random.normal(keys[3], (out_features, self.rmax))
                V = jax.random.normal(keys[4], (in_features, self.rmax))
                self.U = jnp.linalg.svd(U, full_matrices=True)[0]
                self.V = jnp.linalg.svd(V, full_matrices=True)[0]
                self.U_hat = jax.random.normal(keys[5], (out_features, r2))
                self.V_hat = jax.random.normal(keys[6], (in_features, r2))
                self.K = jax.random.normal(keys[7], (out_features, self.rmax))
                self.L = jax.random.normal(keys[8], (in_features, self.rmax))
            else:
                r = self.rank
                s = jnp.sort(jnp.abs(jax.random.normal(keys[2], (r,))))[::-1]
                exp_decay = jnp.array([1.0 / self.decay ** k for k in range(r)])
                self.S_hat = jnp.diag(s * exp_decay)
                U = jax.random.normal(keys[3], (out_features, r))
                V = jax.random.normal(keys[4], (in_features, r))
                self.U = jnp.linalg.svd(U, full_matrices=True)[0][:, :r]
                self.V = jnp.linalg.svd(V, full_matrices=True)[0][:, :r]
                self.K = jax.random.normal(keys[7], (out_features, r))
                self.L = jax.random.normal(keys[8], (in_features, r))
            self.weight = None

    def _bias2d(self):
        if self.bias is None:
            return jnp.zeros((1, self.out_features), jnp.float32)
        return self.bias.reshape(1, self.out_features)

    def forward(self, x):
        b2 = self._bias2d()
        if not self.lr:
            return dense_forward(x, self.weight, b2)
        if self.step == 'K':
            if not self.fixed:
                # TODO(synk): Python-level dynamic_rank slicing retraces per rank;
                # padding inside the wrapper keeps the kernel lane-dense regardless.
                K, V = self.K[:, :self.dynamic_rank], self.V[:, :self.dynamic_rank]
            else:
                K, V = self.K, self.V
            # TODO(synk): reference prints 'Shape of output:' here; omitted side effect.
            return lowrank2_forward(x, V, K, b2)
        elif self.step == 'L':
            if not self.fixed:
                L, U = self.L[:, :self.dynamic_rank], self.U[:, :self.dynamic_rank]
            else:
                L, U = self.L, self.U
            return lowrank2_forward(x, L, U, b2)
        elif self.step == 'S':
            if not self.fixed:
                r2 = 2 * self.dynamic_rank
                S_hat = self.S_hat[:r2, :r2]
                U_hat, V_hat = self.U_hat[:, :r2], self.V_hat[:, :r2]
            else:
                S_hat, U_hat, V_hat = self.S_hat, self.U, self.V
            return lowrank3_forward(x, V_hat, S_hat, U_hat, b2)
        else:
            raise ValueError(f'incorrect step type {self.step}')

    # pure-JAX references (for correctness checking only)
    def forward_ref(self, x):
        b = 0.0 if self.bias is None else self.bias[None, :]
        if not self.lr:
            return x @ self.weight.T + b
        if self.step == 'K':
            K, V = ((self.K, self.V) if self.fixed else
                    (self.K[:, :self.dynamic_rank], self.V[:, :self.dynamic_rank]))
            return (x @ V) @ K.T + b
        if self.step == 'L':
            L, U = ((self.L, self.U) if self.fixed else
                    (self.L[:, :self.dynamic_rank], self.U[:, :self.dynamic_rank]))
            return (x @ L) @ U.T + b
        if self.step == 'S':
            if self.fixed:
                S_hat, U_hat, V_hat = self.S_hat, self.U, self.V
            else:
                r2 = 2 * self.dynamic_rank
                S_hat = self.S_hat[:r2, :r2]
                U_hat, V_hat = self.U_hat[:, :r2], self.V_hat[:, :r2]
            return ((x @ V_hat) @ S_hat.T) @ U_hat.T + b
        raise ValueError(self.step)


if __name__ == "__main__":
    key = jax.random.PRNGKey(0)
    k_param, k_x = jax.random.split(key)

    batch, in_features, out_features, rank = 8, 32, 16, 4
    x = jax.random.normal(k_x, (batch, in_features), jnp.float32)

    ok = True

    # low-rank adaptive layer, default step 'K'
    layer_k = LinearLR(k_param, in_features, out_features, bias=True,
                       rank=rank, fixed=False, step='K')
    out_k = jax.block_until_ready(layer_k.forward(x))
    ok &= bool(jnp.allclose(out_k, layer_k.forward_ref(x), atol=1e-4, rtol=1e-4))
    assert out_k.shape == (batch, out_features)

    # step 'L'
    layer_k.step = 'L'
    out_l = jax.block_until_ready(layer_k.forward(x))
    ok &= bool(jnp.allclose(out_l, layer_k.forward_ref(x), atol=1e-4, rtol=1e-4))

    # step 'S'
    layer_k.step = 'S'
    out_s = jax.block_until_ready(layer_k.forward(x))
    ok &= bool(jnp.allclose(out_s, layer_k.forward_ref(x), atol=1e-4, rtol=1e-4))

    # fixed-rank layer, step 'K'
    layer_f = LinearLR(k_param, in_features, out_features, bias=True,
                       rank=rank, fixed=True, step='K')
    out_f = jax.block_until_ready(layer_f.forward(x))
    ok &= bool(jnp.allclose(out_f, layer_f.forward_ref(x), atol=1e-4, rtol=1e-4))

    # plain full-rank path (rank=None -> F.linear)
    layer_d = LinearLR(k_param, in_features, out_features, bias=True, rank=None)
    out_d = jax.block_until_ready(layer_d.forward(x))
    ok &= bool(jnp.allclose(out_d, layer_d.forward_ref(x), atol=1e-4, rtol=1e-4))

    if ok:
        print("KERNEL_OK")
</pallas_src>

<mosaic_0001>
module attributes {stable_mosaic.version = 11 : i64} {
  func.func @_lowrank2_kernel(%arg0: i32, %arg1: memref<8x128xf32, #tpu.memory_space<vmem>>, %arg2: memref<128x128xf32, #tpu.memory_space<vmem>>, %arg3: memref<128x128xf32, #tpu.memory_space<vmem>>, %arg4: memref<1x128xf32, #tpu.memory_space<vmem>>, %arg5: memref<8x128xf32, #tpu.memory_space<vmem>>) attributes {dimension_semantics = [#tpu.dimension_semantics<parallel>], iteration_bounds = array<i64: 1>, scalar_prefetch = 0 : i64, scratch_operands = 0 : i64, tpu.core_type = #tpu.core_type<tc>, window_params = [{transform_indices = @transform_0, window_bounds = array<i64: 8, 128>}, {pipeline_mode = #tpu.pipeline_mode<synchronous>, transform_indices = @transform_1, window_bounds = array<i64: 128, 128>}, {pipeline_mode = #tpu.pipeline_mode<synchronous>, transform_indices = @transform_2, window_bounds = array<i64: 128, 128>}, {pipeline_mode = #tpu.pipeline_mode<synchronous>, transform_indices = @transform_3, window_bounds = array<i64: 1, 128>}, {transform_indices = @transform_4, window_bounds = array<i64: 8, 128>}]} {
    %c0 = arith.constant 0 : index
    %c0_0 = arith.constant 0 : index
    %0 = vector.load %arg1[%c0, %c0_0] : memref<8x128xf32, #tpu.memory_space<vmem>>, vector<8x128xf32>
    %c0_1 = arith.constant 0 : index
    %c0_2 = arith.constant 0 : index
    %1 = vector.load %arg2[%c0_1, %c0_2] : memref<128x128xf32, #tpu.memory_space<vmem>>, vector<128x128xf32>
    %cst = arith.constant dense<0.000000e+00> : vector<8x128xf32>
    %2 = tpu.matmul %0, %1, %cst {dimension_numbers = #tpu.dot_dimension_numbers<[1], [0], [0], [1], [0, 0, 1, 1], [], []>} : vector<8x128xf32>, vector<128x128xf32>, vector<8x128xf32> -> vector<8x128xf32>
    %c0_3 = arith.constant 0 : index
    %c0_4 = arith.constant 0 : index
    %3 = vector.load %arg3[%c0_3, %c0_4] : memref<128x128xf32, #tpu.memory_space<vmem>>, vector<128x128xf32>
    %cst_5 = arith.constant dense<0.000000e+00> : vector<8x128xf32>
    %4 = tpu.matmul %2, %3, %cst_5 {dimension_numbers = #tpu.dot_dimension_numbers<[1], [1], [0], [0], [0, 0, 1, 0], [], []>} : vector<8x128xf32>, vector<128x128xf32>, vector<8x128xf32> -> vector<8x128xf32>
    %c0_6 = arith.constant 0 : index
    %c0_7 = arith.constant 0 : index
    %5 = vector.load %arg4[%c0_6, %c0_7] : memref<1x128xf32, #tpu.memory_space<vmem>>, vector<1x128xf32>
    %6 = vector.broadcast %5 : vector<1x128xf32> to vector<8x128xf32>
    %7 = arith.addf %4, %6 : vector<8x128xf32>
    %c0_8 = arith.constant 0 : index
    %c0_9 = arith.constant 0 : index
    %8 = vector.load %arg5[%c0_8, %c0_9] : memref<8x128xf32, #tpu.memory_space<vmem>>, vector<8x128xf32>
    tpu.vector_store %arg5[%c0_8, %c0_9], %7 {strides = array<i32>} : memref<8x128xf32, #tpu.memory_space<vmem>>, vector<8x128xf32>,
    return
  }
  func.func @transform_0(%arg0: i32) -> (i32, i32) {
    %c0_i32 = arith.constant 0 : i32
    %c0_i32_0 = arith.constant 0 : i32
    return %arg0, %c0_i32 : i32, i32
  }
  func.func @transform_1(%arg0: i32) -> (i32, i32) {
    %c0_i32 = arith.constant 0 : i32
    %c0_i32_0 = arith.constant 0 : i32
    %c0_i32_1 = arith.constant 0 : i32
    return %c0_i32, %c0_i32_0 : i32, i32
  }
  func.func @transform_2(%arg0: i32) -> (i32, i32) {
    %c0_i32 = arith.constant 0 : i32
    %c0_i32_0 = arith.constant 0 : i32
    %c0_i32_1 = arith.constant 0 : i32
    return %c0_i32, %c0_i32_0 : i32, i32
  }
  func.func @transform_3(%arg0: i32) -> (i32, i32) {
    %c0_i32 = arith.constant 0 : i32
    %c0_i32_0 = arith.constant 0 : i32
    %c0_i32_1 = arith.constant 0 : i32
    return %c0_i32, %c0_i32_0 : i32, i32
  }
  func.func @transform_4(%arg0: i32) -> (i32, i32) {
    %c0_i32 = arith.constant 0 : i32
    %c0_i32_0 = arith.constant 0 : i32
    return %arg0, %c0_i32 : i32, i32
  }
}

</mosaic_0001>

<llo_original>
// kernel: lowrank2_forward.1
$region0: #{lowrank2_forward.1}
  #allocation0 [shape = 'u32[]', space=smem, size = 0x4, offset = 0x4, fixed_abs, tag = 'smem constant byte address 0x4 - core index']
  #allocation1 [shape = 'u32[144,128]{1,0:T(1,128)}', space=vmem, size = 0x12000, scoped, tag = 'internal scratch']
  %s0 = inlined_call_operand.vmem [shape: f32[8,128], index: 0, kind: input, shape index: {}]
  %s1 = inlined_call_operand.vmem [shape: f32[128,128], index: 1, kind: input, shape index: {}]
  %s2 = inlined_call_operand.vmem [shape: f32[128,128], index: 2, kind: input, shape index: {}]
  %s3 = inlined_call_operand.vmem [shape: f32[1,128], index: 3, kind: input, shape index: {}]
  %s4 = inlined_call_operand.hbm [shape: f32[8,128], index: 4, kind: output, shape index: {}]
  %s5 = sld [smem:[#allocation0]]
  $region26: #{lowrank2_forward.1} parent=0
    _
  %s7 = ssub.s32 1, %s5
  %s8 = scalar_select 0, %s7, %s5
  $region1: #{lowrank2_forward.1} parent=0
    #allocation2 [shape = 'u8[4096]{0}', space=vmem, size = 0x1000, scoped, tag = 'output window, operand 0, single buffered']
    #allocation3 [shape = 's32[1]{0}', space=sflag, size = 0x4, scoped, tag = 'scoped memory for lowrank2_forward.1']
    %9 = vsyncpa [#allocation3], 0
    // Predicated region
    $region2: #{lowrank2_forward.1} parent=1 // pred_check
      _
    $region3: #{lowrank2_forward.1} parent=1 // pred_check_branch
      %11 = sbr.rel (0) target = $region5
    $region4: #{lowrank2_forward.1} parent=1 // pred_region
      _
    $region5: #{lowrank2_forward.1} parent=1 // pred_fallthru
      _
    // Predicated region
    $region6: #{lowrank2_forward.1} parent=1 // pred_check
      _
    $region7: #{lowrank2_forward.1} parent=1 // pred_check_branch
      %13 = sbr.rel (0) target = $region9
    $region8: #{lowrank2_forward.1} parent=1 // pred_region
      _
    $region9: #{lowrank2_forward.1} parent=1 // pred_fallthru
      _
    // Predicated region
    $region10: #{lowrank2_forward.1} parent=1 // pred_check
      _
    $region11: #{lowrank2_forward.1} parent=1 // pred_check_branch
      %15 = sbr.rel (0) target = $region13
    $region12: #{lowrank2_forward.1} parent=1 // pred_region
      _
    $region13: #{lowrank2_forward.1} parent=1 // pred_fallthru
      _
    // Predicated region
    $region14: #{lowrank2_forward.1} parent=1 // pred_check
      _
    $region15: #{lowrank2_forward.1} parent=1 // pred_check_branch
      %17 = sbr.rel (0) target = $region17
    $region16: #{lowrank2_forward.1} parent=1 // pred_region
      _
    $region17: #{lowrank2_forward.1} parent=1 // pred_fallthru
      _
    %v18 = vld [vmem:[%s0] sm:$0xff]
    %v19 = vld [vmem:[%s1] sm:$0xff]
    %v20 = vld [vmem:[%s1 + $0x8] sm:$0xff]
    %v21 = vld [vmem:[%s1 + $0x10] sm:$0xff]
    %v22 = vld [vmem:[%s1 + $0x18] sm:$0xff]
    %v23 = vld [vmem:[%s1 + $0x20] sm:$0xff]
    %v24 = vld [vmem:[%s1 + $0x28] sm:$0xff]
    %v25 = vld [vmem:[%s1 + $0x30] sm:$0xff]
    %v26 = vld [vmem:[%s1 + $0x38] sm:$0xff]
    %v27 = vld [vmem:[%s1 + $0x40] sm:$0xff]
    %v28 = vld [vmem:[%s1 + $0x48] sm:$0xff]
    %v29 = vld [vmem:[%s1 + $0x50] sm:$0xff]
    %v30 = vld [vmem:[%s1 + $0x58] sm:$0xff]
    %v31 = vld [vmem:[%s1 + $0x60] sm:$0xff]
    %v32 = vld [vmem:[%s1 + $0x68] sm:$0xff]
    %v33 = vld [vmem:[%s1 + $0x70] sm:$0xff]
    %v34 = vld [vmem:[%s1 + $0x78] sm:$0xff]
    %35 = vmatprep.subr.mxu0 0.0
    %36 = vmatpush1.msra.mxu0 %v19
    %37 = vmatprep.subr.mxu0 0.0
    %38 = vmatpush1.msra.mxu0 %v20
    %39 = vmatprep.subr.mxu0 0.0
    %40 = vmatpush1.msra.mxu0 %v21
    %41 = vmatprep.subr.mxu0 0.0
    %42 = vmatpush1.msra.mxu0 %v22
    %43 = vmatprep.subr.mxu0 0.0
    %44 = vmatpush1.msra.mxu0 %v23
    %45 = vmatprep.subr.mxu0 0.0
    %46 = vmatpush1.msra.mxu0 %v24
    %47 = vmatprep.subr.mxu0 0.0
    %48 = vmatpush1.msra.mxu0 %v25
    %49 = vmatprep.subr.mxu0 0.0
    %50 = vmatpush1.msra.mxu0 %v26
    %51 = vmatprep.subr.mxu0 0.0
    %52 = vmatpush1.msra.mxu0 %v27
    %53 = vmatprep.subr.mxu0 0.0
    %54 = vmatpush1.msra.mxu0 %v28
    %55 = vmatprep.subr.mxu0 0.0
    %56 = vmatpush1.msra.mxu0 %v29
    %57 = vmatprep.subr.mxu0 0.0
    %58 = vmatpush1.msra.mxu0 %v30
    %59 = vmatprep.subr.mxu0 0.0
    %60 = vmatpush1.msra.mxu0 %v31
    %61 = vmatprep.subr.mxu0 0.0
    %62 = vmatpush1.msra.mxu0 %v32
    %63 = vmatprep.subr.mxu0 0.0
    %64 = vmatpush1.msra.mxu0 %v33
    %65 = vmatprep.subr.mxu0 0.0
    %66 = vmatpush1.msra.mxu0 %v34
    %67 = vmatprep.subr.mxu0 0.0
    %68 = vmatpush1.msra.mxu0 0.0
    %69 = vmatprep.subr.mxu0 0.0
    %70 = vmatpush1.msra.mxu0 0.0
    %71 = vmatprep.subr.mxu0 0.0
    %72 = vmatpush1.msra.mxu0 0.0
    %73 = vmatprep.subr.mxu0 0.0
    %74 = vmatpush1.msra.mxu0 0.0
    %75 = vmatprep.subr.mxu0 0.0
    %76 = vmatpush1.msra.mxu0 0.0
    %77 = vmatprep.subr.mxu0 0.0
    %78 = vmatpush1.msra.mxu0 0.0
    %79 = vmatprep.subr.mxu0 0.0
    %80 = vmatpush1.msra.mxu0 0.0
    %81 = vmatprep.subr.mxu0 0.0
    %82 = vmatpush1.msra.mxu0 0.0
    %83 = vmatprep.subr.mxu0 0.0
    %84 = vmatpush1.msra.mxu0 0.0
    %85 = vmatprep.subr.mxu0 0.0
    %86 = vmatpush1.msra.mxu0 0.0
    %87 = vmatprep.subr.mxu0 0.0
    %88 = vmatpush1.msra.mxu0 0.0
    %89 = vmatprep.subr.mxu0 0.0
    %90 = vmatpush1.msra.mxu0 0.0
    %91 = vmatprep.subr.mxu0 0.0
    %92 = vmatpush1.msra.mxu0 0.0
    %93 = vmatprep.subr.mxu0 0.0
    %94 = vmatpush1.msra.mxu0 0.0
    %95 = vmatprep.subr.mxu0 0.0
    %96 = vmatpush1.msra.mxu0 0.0
    %97 = vmatprep.subr.mxu0 0.0
    %98 = vmatpush1.msra.mxu0 0.0
    %99 = vmatprep.mubr.f32.mxu0 0.0
    %100 = vmatmul.mubr.f32.gmra.mrb[0].mxu0 %v18
    %v101 = vpop.f32.mrb[0].mxu0
    %v102 = vadd.f32 0.0, %v101
    %v103 = vpop.f32.mrb[0].mxu0
    %104 = vdwg.mxu0
    %v105 = vld [vmem:[%s2] sm:$0xff]
    %v106 = vld [vmem:[%s2 + $0x8] sm:$0xff]
    %v107 = vld [vmem:[%s2 + $0x10] sm:$0xff]
    %v108 = vld [vmem:[%s2 + $0x18] sm:$0xff]
    %v109 = vld [vmem:[%s2 + $0x20] sm:$0xff]
    %v110 = vld [vmem:[%s2 + $0x28] sm:$0xff]
    %v111 = vld [vmem:[%s2 + $0x30] sm:$0xff]
    %v112 = vld [vmem:[%s2 + $0x38] sm:$0xff]
    %v113 = vld [vmem:[%s2 + $0x40] sm:$0xff]
    %v114 = vld [vmem:[%s2 + $0x48] sm:$0xff]
    %v115 = vld [vmem:[%s2 + $0x50] sm:$0xff]
    %v116 = vld [vmem:[%s2 + $0x58] sm:$0xff]
    %v117 = vld [vmem:[%s2 + $0x60] sm:$0xff]
    %v118 = vld [vmem:[%s2 + $0x68] sm:$0xff]
    %v119 = vld [vmem:[%s2 + $0x70] sm:$0xff]
    %v120 = vld [vmem:[%s2 + $0x78] sm:$0xff]
    %v121 = vld [vmem:[%s3] sm:$0x1]
    %v123 = vlaneseq
    %v124 = vshrl.u32 %v123, 7
    %v125 = vsub.s32 0, %v124
    %v126 = vrot.slane %v121, %v125
    %128 = vmatprep.subr.mxu0 0.0
    %129 = vmatpush1.xpose.msra.mxu0 %v105
    %130 = vmatprep.subr.mxu0 0.0
    %131 = vmatpush1.xpose.msra.mxu0 %v106
    %132 = vmatprep.subr.mxu0 0.0
    %133 = vmatpush1.xpose.msra.mxu0 %v107
    %134 = vmatprep.subr.mxu0 0.0
    %135 = vmatpush1.xpose.msra.mxu0 %v108
    %136 = vmatprep.subr.mxu0 0.0
    %137 = vmatpush1.xpose.msra.mxu0 %v109
    %138 = vmatprep.subr.mxu0 0.0
    %139 = vmatpush1.xpose.msra.mxu0 %v110
    %140 = vmatprep.subr.mxu0 0.0
    %141 = vmatpush1.xpose.msra.mxu0 %v111
    %142 = vmatprep.subr.mxu0 0.0
    %143 = vmatpush1.xpose.msra.mxu0 %v112
    %144 = vmatprep.subr.mxu0 0.0
    %145 = vmatpush1.xpose.msra.mxu0 %v113
    %146 = vmatprep.subr.mxu0 0.0
    %147 = vmatpush1.xpose.msra.mxu0 %v114
    %148 = vmatprep.subr.mxu0 0.0
    %149 = vmatpush1.xpose.msra.mxu0 %v115
    %150 = vmatprep.subr.mxu0 0.0
    %151 = vmatpush1.xpose.msra.mxu0 %v116
    %152 = vmatprep.subr.mxu0 0.0
    %153 = vmatpush1.xpose.msra.mxu0 %v117
    %154 = vmatprep.subr.mxu0 0.0
    %155 = vmatpush1.xpose.msra.mxu0 %v118
    %156 = vmatprep.subr.mxu0 0.0
    %157 = vmatpush1.xpose.msra.mxu0 %v119
    %158 = vmatprep.subr.mxu0 0.0
    %159 = vmatpush1.xpose.msra.mxu0 %v120
    %160 = vmatprep.subr.mxu0 0.0
    %161 = vmatpush1.xpose.msra.mxu0 0.0
    %162 = vmatprep.subr.mxu0 0.0
    %163 = vmatpush1.xpose.msra.mxu0 0.0
    %164 = vmatprep.subr.mxu0 0.0
    %165 = vmatpush1.xpose.msra.mxu0 0.0
    %166 = vmatprep.subr.mxu0 0.0
    %167 = vmatpush1.xpose.msra.mxu0 0.0
    %168 = vmatprep.subr.mxu0 0.0
    %169 = vmatpush1.xpose.msra.mxu0 0.0
    %170 = vmatprep.subr.mxu0 0.0
    %171 = vmatpush1.xpose.msra.mxu0 0.0
    %172 = vmatprep.subr.mxu0 0.0
    %173 = vmatpush1.xpose.msra.mxu0 0.0
    %174 = vmatprep.subr.mxu0 0.0
    %175 = vmatpush1.xpose.msra.mxu0 0.0
    %176 = vmatprep.subr.mxu0 0.0
    %177 = vmatpush1.xpose.msra.mxu0 0.0
    %178 = vmatprep.subr.mxu0 0.0
    %179 = vmatpush1.xpose.msra.mxu0 0.0
    %180 = vmatprep.subr.mxu0 0.0
    %181 = vmatpush1.xpose.msra.mxu0 0.0
    %182 = vmatprep.subr.mxu0 0.0
    %183 = vmatpush1.xpose.msra.mxu0 0.0
    %184 = vmatprep.subr.mxu0 0.0
    %185 = vmatpush1.xpose.msra.mxu0 0.0
    %186 = vmatprep.subr.mxu0 0.0
    %187 = vmatpush1.xpose.msra.mxu0 0.0
    %188 = vmatprep.subr.mxu0 0.0
    %189 = vmatpush1.xpose.msra.mxu0 0.0
    %190 = vmatprep.subr.mxu0 0.0
    %191 = vmatpush1.xpose.msra.mxu0 0.0
    %192 = vmatprep.mubr.f32.mxu0 0.0
    %193 = vmatmul.mubr.f32.gmra.mrb[0].mxu0 %v102
    %v194 = vpop.f32.mrb[0].mxu0
    %v195 = vadd.f32 %v126, %v194
    %v196 = vpop.f32.mrb[0].mxu0
    %197 = vdwg.mxu0
    %198 = vst [vmem:[#allocation2] sm:$0xff] %v195
    // Predicated region
    $region18: #{lowrank2_forward.1} parent=1 // pred_check
      _
    $region19: #{lowrank2_forward.1} parent=1 // pred_check_branch
      %200 = sbr.rel (0) target = $region21
    $region20: #{lowrank2_forward.1} parent=1 // pred_region
      %s202 = ssub.s32 128, 128
      %203 = vsyncadd [#allocation3], %s202
      %s205 = sshll.u32 [#allocation2], 4
      %s206 = int_to_ptr.vmem [resolvable:$true] %s205
      %208 = dma.vmem_to_hbm [thread:$0]  %s206, 128, %s4, [#allocation3]
    $region21: #{lowrank2_forward.1} parent=1 // pred_fallthru
      _
    // Predicated region
    $region22: #{lowrank2_forward.1} parent=1 // pred_check
      _
    $region23: #{lowrank2_forward.1} parent=1 // pred_check_branch
      %210 = sbr.rel (0) target = $region25
    $region24: #{lowrank2_forward.1} parent=1 // pred_region
      %211 = dma.done [#allocation3], 128
    $region25: #{lowrank2_forward.1} parent=1 // pred_fallthru
      _
    %212 = vsyncpa [#allocation3], 1

</llo_original>
